<compile_context>
chip_gen: v5e
topology: v5e:2x2
jax: 0.10.0
libtpu: 0.0.40
codegen_flags: <defaults>
</compile_context>

<pallas_src>
import functools

import jax
import jax.numpy as jnp
from jax.experimental import pallas as pl
from jax.experimental.pallas import tpu as pltpu


def _round_up(x, m):
    return ((x + m - 1) // m) * m


def _decoder_kernel(z_ref, w1_ref, b1_ref, w2_ref, b2_ref, w3_ref, b3_ref, out_ref):
    # fc1 + ReLU  (bf16 inputs, f32 MXU accumulation, f32 bias)
    h1 = jnp.dot(z_ref[...], w1_ref[...], preferred_element_type=jnp.float32)
    h1 = jnp.maximum(h1 + b1_ref[...], 0.0).astype(w2_ref.dtype)
    # fc1a + ReLU
    h2 = jnp.dot(h1, w2_ref[...], preferred_element_type=jnp.float32)
    h2 = jnp.maximum(h2 + b2_ref[...], 0.0).astype(w3_ref.dtype)
    # fc2 + Sigmoid.  sigmoid(x) = 0.5*(1 + tanh(x/2)): a single EUP push per
    # element (vs exp + reciprocal), then store directly in the output dtype.
    logits = jnp.dot(h2, w3_ref[...], preferred_element_type=jnp.float32) + b3_ref[...]
    out_ref[...] = (0.5 * (1.0 + jnp.tanh(0.5 * logits))).astype(out_ref.dtype)


def prepare_decoder_params(w1, b1, w2, b2, w3, b3, compute_dtype=jnp.bfloat16):
    """One-time weight prep (call outside the per-step hot path).

    Weights are (in, out) i.e. already transposed vs. torch.nn.Linear.weight;
    biases may be (out,) or (1, out).  Hidden dims are zero-padded to multiples
    of 128 for lane-dense intermediates (exact because ReLU(0)=0); the 784-wide
    output dim is left unpadded so the kernel stores exactly 784 lanes.
    """
    cd = compute_dtype
    z_dim, h2_dim = w1.shape
    h1_dim = w2.shape[1]
    out_dim = w3.shape[1]
    h2p = _round_up(h2_dim, 128)
    h1p = _round_up(h1_dim, 128)

    b1 = jnp.asarray(b1).reshape(1, -1)
    b2 = jnp.asarray(b2).reshape(1, -1)
    b3 = jnp.asarray(b3).reshape(1, -1)

    w1p = jnp.zeros((z_dim, h2p), cd).at[:, :h2_dim].set(w1.astype(cd))
    b1p = jnp.zeros((1, h2p), jnp.float32).at[:, :h2_dim].set(b1.astype(jnp.float32))
    w2p = jnp.zeros((h2p, h1p), cd).at[:h2_dim, :h1_dim].set(w2.astype(cd))
    b2p = jnp.zeros((1, h1p), jnp.float32).at[:, :h1_dim].set(b2.astype(jnp.float32))
    w3p = jnp.zeros((h1p, out_dim), cd).at[:h1_dim, :].set(w3.astype(cd))
    b3p = b3.astype(jnp.float32)
    return (w1p, b1p, w2p, b2p, w3p, b3p)


@functools.partial(jax.jit, static_argnames=("block_b", "out_dtype"))
def linear_decoder(z, params, *, block_b=1024, out_dtype=jnp.bfloat16):
    """z: (B, z_dim); params from prepare_decoder_params. Returns (B, 784) out_dtype."""
    w1p, b1p, w2p, b2p, w3p, b3p = params
    B, z_dim = z.shape
    out_dim = w3p.shape[1]
    cd = w1p.dtype

    # ---- Batch tiling (all trace-time Python; B is static under jit). ----
    # bf16 packs 16 sublanes per vreg -> keep tiles a multiple of 16.
    tile = min(block_b, _round_up(B, 16))
    # Prefer >= 2 grid steps so the "parallel" batch axis can feed both v7x
    # TensorCores instead of leaving one idle for B <= block_b.
    if tile >= _round_up(B, 16) and B > 16:
        tile = max(16, _round_up((B + 1) // 2, 16))
    # Bound tail-padding waste (~<=12%): redundant padded rows are redundant
    # output HBM writes, i.e. directly on the bottleneck.
    min_tile = 16 if B < 128 else 128
    while tile > min_tile and (_round_up(B, tile) - B) * 8 > B:
        tile = max(min_tile, _round_up(tile // 2, 16))
    Bp = _round_up(B, tile)

    zc = z.astype(cd)
    if Bp != B:
        zc = jnp.zeros((Bp, z_dim), cd).at[:B].set(zc)

    grid = (Bp // tile,)
    # Weights/biases are tiny and fully VMEM-resident every step (constant
    # index_map).  Default double-buffering wastes ~0.3 MiB VMEM, which is
    # negligible here, so we keep the default pipelining for robustness.
    resident = lambda shape: pl.BlockSpec(shape, lambda i: (0, 0))

    out_padded = pl.pallas_call(
        _decoder_kernel,
        out_shape=jax.ShapeDtypeStruct((Bp, out_dim), out_dtype),
        grid_spec=pltpu.PrefetchScalarGridSpec(
            num_scalar_prefetch=0,
            grid=grid,
            in_specs=[
                pl.BlockSpec((tile, z_dim), lambda i: (i, 0)),
                resident(w1p.shape),
                resident(b1p.shape),
                resident(w2p.shape),
                resident(b2p.shape),
                resident(w3p.shape),  # (h1p, 784): last dim == full dim is legal
                resident(b3p.shape),
            ],
            # Output block is the full 784-lane width of the array (legal under
            # the (8,128) rule); only the final lane-tile of stores is masked.
            out_specs=pl.BlockSpec((tile, out_dim), lambda i: (i, 0)),
        ),
        compiler_params=pltpu.CompilerParams(
            # Batch axis shards across v7x's two TensorCores when grid >= 2.
            dimension_semantics=("parallel",),
            # Headroom for 1024-2048 row tiles; safe within v7x's 64 MiB VMEM.
            vmem_limit_bytes=48 * 1024 * 1024,
        ),
    )(zc, w1p, b1p, w2p, b2p, w3p, b3p)

    return out_padded if Bp == B else out_padded[:B]


def _init_linear(key, in_features, out_features):
    """PyTorch nn.Linear default init: U(-1/sqrt(in), 1/sqrt(in)); stored as (in, out)."""
    kw, kb = jax.random.split(key)
    bound = 1.0 / (in_features ** 0.5)
    w = jax.random.uniform(kw, (in_features, out_features), jnp.float32,
                           minval=-bound, maxval=bound)
    b = jax.random.uniform(kb, (1, out_features), jnp.float32,
                           minval=-bound, maxval=bound)
    return w, b


if __name__ == "__main__":
    # Small shapes consistent with the module's forward.
    B, z_dim, h1_dim, h2_dim = 8, 32, 128, 64
    out_dim = 784

    key = jax.random.PRNGKey(0)
    k_z, k1, k2, k3 = jax.random.split(key, 4)

    z = jax.random.normal(k_z, (B, z_dim), jnp.float32)
    w1, b1 = _init_linear(k1, z_dim, h2_dim)    # fc1:  z_dim  -> h2_dim
    w2, b2 = _init_linear(k2, h2_dim, h1_dim)   # fc1a: h2_dim -> h1_dim
    w3, b3 = _init_linear(k3, h1_dim, out_dim)  # fc2:  h1_dim -> 784

    params = prepare_decoder_params(w1, b1, w2, b2, w3, b3)  # one-time prep
    img = linear_decoder(z, params)
    img = jax.block_until_ready(img)

    # Pure-JAX f32 reference; bf16 weights/activations/output with f32 MXU
    # accumulation keep errors well inside this tolerance (sigmoid in [0, 1]).
    h1 = jnp.maximum(z @ w1 + b1, 0.0)
    h1a = jnp.maximum(h1 @ w2 + b2, 0.0)
    ref = jax.nn.sigmoid(h1a @ w3 + b3)
    assert img.shape == (B, out_dim)
    err = float(jnp.max(jnp.abs(img.astype(jnp.float32) - ref)))
    assert err < 2e-2, err

    print("KERNEL_OK")
</pallas_src>

<mosaic_0001>
module attributes {stable_mosaic.version = 11 : i64} {
  func.func @_decoder_kernel(%arg0: i32, %arg1: memref<16x32xbf16, #tpu.memory_space<vmem>>, %arg2: memref<32x128xbf16, #tpu.memory_space<vmem>>, %arg3: memref<1x128xf32, #tpu.memory_space<vmem>>, %arg4: memref<128x128xbf16, #tpu.memory_space<vmem>>, %arg5: memref<1x128xf32, #tpu.memory_space<vmem>>, %arg6: memref<128x784xbf16, #tpu.memory_space<vmem>>, %arg7: memref<1x784xf32, #tpu.memory_space<vmem>>, %arg8: memref<16x784xbf16, #tpu.memory_space<vmem>>) attributes {dimension_semantics = [#tpu.dimension_semantics<parallel>], iteration_bounds = array<i64: 1>, scalar_prefetch = 0 : i64, scratch_operands = 0 : i64, tpu.core_type = #tpu.core_type<tc>, window_params = [{transform_indices = @transform_0, window_bounds = array<i64: 16, 32>}, {pipeline_mode = #tpu.pipeline_mode<synchronous>, transform_indices = @transform_1, window_bounds = array<i64: 32, 128>}, {pipeline_mode = #tpu.pipeline_mode<synchronous>, transform_indices = @transform_2, window_bounds = array<i64: 1, 128>}, {pipeline_mode = #tpu.pipeline_mode<synchronous>, transform_indices = @transform_3, window_bounds = array<i64: 128, 128>}, {pipeline_mode = #tpu.pipeline_mode<synchronous>, transform_indices = @transform_4, window_bounds = array<i64: 1, 128>}, {pipeline_mode = #tpu.pipeline_mode<synchronous>, transform_indices = @transform_5, window_bounds = array<i64: 128, 784>}, {pipeline_mode = #tpu.pipeline_mode<synchronous>, transform_indices = @transform_6, window_bounds = array<i64: 1, 784>}, {transform_indices = @transform_7, window_bounds = array<i64: 16, 784>}]} {
    %c0 = arith.constant 0 : index
    %c0_0 = arith.constant 0 : index
    %0 = vector.load %arg1[%c0, %c0_0] : memref<16x32xbf16, #tpu.memory_space<vmem>>, vector<16x32xbf16>
    %c0_1 = arith.constant 0 : index
    %c0_2 = arith.constant 0 : index
    %1 = vector.load %arg2[%c0_1, %c0_2] : memref<32x128xbf16, #tpu.memory_space<vmem>>, vector<32x128xbf16>
    %cst = arith.constant dense<0.000000e+00> : vector<16x128xf32>
    %2 = tpu.matmul %0, %1, %cst {dimension_numbers = #tpu.dot_dimension_numbers<[1], [0], [0], [1], [0, 0, 1, 1], [], []>} : vector<16x32xbf16>, vector<32x128xbf16>, vector<16x128xf32> -> vector<16x128xf32>
    %c0_3 = arith.constant 0 : index
    %c0_4 = arith.constant 0 : index
    %3 = vector.load %arg3[%c0_3, %c0_4] : memref<1x128xf32, #tpu.memory_space<vmem>>, vector<1x128xf32>
    %4 = vector.broadcast %3 : vector<1x128xf32> to vector<16x128xf32>
    %5 = arith.addf %2, %4 : vector<16x128xf32>
    %cst_5 = arith.constant 0.000000e+00 : f32
    %6 = vector.broadcast %cst_5 : f32 to vector<16x128xf32>
    %7 = arith.maximumf %5, %6 : vector<16x128xf32>
    %8 = arith.truncf %7 : vector<16x128xf32> to vector<16x128xbf16>
    %c0_6 = arith.constant 0 : index
    %c0_7 = arith.constant 0 : index
    %9 = vector.load %arg4[%c0_6, %c0_7] : memref<128x128xbf16, #tpu.memory_space<vmem>>, vector<128x128xbf16>
    %cst_8 = arith.constant dense<0.000000e+00> : vector<16x128xf32>
    %10 = tpu.matmul %8, %9, %cst_8 {dimension_numbers = #tpu.dot_dimension_numbers<[1], [0], [0], [1], [0, 0, 1, 1], [], []>} : vector<16x128xbf16>, vector<128x128xbf16>, vector<16x128xf32> -> vector<16x128xf32>
    %c0_9 = arith.constant 0 : index
    %c0_10 = arith.constant 0 : index
    %11 = vector.load %arg5[%c0_9, %c0_10] : memref<1x128xf32, #tpu.memory_space<vmem>>, vector<1x128xf32>
    %12 = vector.broadcast %11 : vector<1x128xf32> to vector<16x128xf32>
    %13 = arith.addf %10, %12 : vector<16x128xf32>
    %cst_11 = arith.constant 0.000000e+00 : f32
    %14 = vector.broadcast %cst_11 : f32 to vector<16x128xf32>
    %15 = arith.maximumf %13, %14 : vector<16x128xf32>
    %16 = arith.truncf %15 : vector<16x128xf32> to vector<16x128xbf16>
    %c0_12 = arith.constant 0 : index
    %c0_13 = arith.constant 0 : index
    %17 = vector.load %arg6[%c0_12, %c0_13] : memref<128x784xbf16, #tpu.memory_space<vmem>>, vector<128x784xbf16>
    %cst_14 = arith.constant dense<0.000000e+00> : vector<16x784xf32>
    %18 = tpu.matmul %16, %17, %cst_14 {dimension_numbers = #tpu.dot_dimension_numbers<[1], [0], [0], [1], [0, 0, 1, 1], [], []>} : vector<16x128xbf16>, vector<128x784xbf16>, vector<16x784xf32> -> vector<16x784xf32>
    %c0_15 = arith.constant 0 : index
    %c0_16 = arith.constant 0 : index
    %19 = vector.load %arg7[%c0_15, %c0_16] : memref<1x784xf32, #tpu.memory_space<vmem>>, vector<1x784xf32>
    %20 = vector.broadcast %19 : vector<1x784xf32> to vector<16x784xf32>
    %21 = arith.addf %18, %20 : vector<16x784xf32>
    %cst_17 = arith.constant 5.000000e-01 : f32
    %22 = vector.broadcast %cst_17 : f32 to vector<16x784xf32>
    %23 = arith.mulf %22, %21 : vector<16x784xf32>
    %24 = math.tanh %23 : vector<16x784xf32>
    %cst_18 = arith.constant 1.000000e+00 : f32
    %25 = vector.broadcast %cst_18 : f32 to vector<16x784xf32>
    %26 = arith.addf %25, %24 : vector<16x784xf32>
    %cst_19 = arith.constant 5.000000e-01 : f32
    %27 = vector.broadcast %cst_19 : f32 to vector<16x784xf32>
    %28 = arith.mulf %27, %26 : vector<16x784xf32>
    %29 = arith.truncf %28 : vector<16x784xf32> to vector<16x784xbf16>
    %c0_20 = arith.constant 0 : index
    %c0_21 = arith.constant 0 : index
    %30 = vector.load %arg8[%c0_20, %c0_21] : memref<16x784xbf16, #tpu.memory_space<vmem>>, vector<16x784xbf16>
    tpu.vector_store %arg8[%c0_20, %c0_21], %29 {strides = array<i32>} : memref<16x784xbf16, #tpu.memory_space<vmem>>, vector<16x784xbf16>,
    return
  }
  func.func @transform_0(%arg0: i32) -> (i32, i32) {
    %c0_i32 = arith.constant 0 : i32
    %c0_i32_0 = arith.constant 0 : i32
    return %arg0, %c0_i32 : i32, i32
  }
  func.func @transform_1(%arg0: i32) -> (i32, i32) {
    %c0_i32 = arith.constant 0 : i32
    %c0_i32_0 = arith.constant 0 : i32
    %c0_i32_1 = arith.constant 0 : i32
    return %c0_i32, %c0_i32_0 : i32, i32
  }
  func.func @transform_2(%arg0: i32) -> (i32, i32) {
    %c0_i32 = arith.constant 0 : i32
    %c0_i32_0 = arith.constant 0 : i32
    %c0_i32_1 = arith.constant 0 : i32
    return %c0_i32, %c0_i32_0 : i32, i32
  }
  func.func @transform_3(%arg0: i32) -> (i32, i32) {
    %c0_i32 = arith.constant 0 : i32
    %c0_i32_0 = arith.constant 0 : i32
    %c0_i32_1 = arith.constant 0 : i32
    return %c0_i32, %c0_i32_0 : i32, i32
  }
  func.func @transform_4(%arg0: i32) -> (i32, i32) {
    %c0_i32 = arith.constant 0 : i32
    %c0_i32_0 = arith.constant 0 : i32
    %c0_i32_1 = arith.constant 0 : i32
    return %c0_i32, %c0_i32_0 : i32, i32
  }
  func.func @transform_5(%arg0: i32) -> (i32, i32) {
    %c0_i32 = arith.constant 0 : i32
    %c0_i32_0 = arith.constant 0 : i32
    %c0_i32_1 = arith.constant 0 : i32
    return %c0_i32, %c0_i32_0 : i32, i32
  }
  func.func @transform_6(%arg0: i32) -> (i32, i32) {
    %c0_i32 = arith.constant 0 : i32
    %c0_i32_0 = arith.constant 0 : i32
    %c0_i32_1 = arith.constant 0 : i32
    return %c0_i32, %c0_i32_0 : i32, i32
  }
  func.func @transform_7(%arg0: i32) -> (i32, i32) {
    %c0_i32 = arith.constant 0 : i32
    %c0_i32_0 = arith.constant 0 : i32
    return %arg0, %c0_i32 : i32, i32
  }
}

</mosaic_0001>

<llo_original>
// kernel: linear_decoder.1
$region0: #{linear_decoder.1}
  #allocation0 [shape = 'u32[]', space=smem, size = 0x4, offset = 0x4, fixed_abs, tag = 'smem constant byte address 0x4 - core index']
  #allocation1 [shape = 'u32[72,128]{1,0:T(1,128)}', space=vmem, size = 0x9000, scoped, tag = 'internal scratch']
  %s0 = inlined_call_operand.vmem [shape: bf16[16,32], index: 0, kind: input, shape index: {}]
  %s1 = inlined_call_operand.vmem [shape: bf16[32,128], index: 1, kind: input, shape index: {}]
  %s2 = inlined_call_operand.vmem [shape: f32[1,128], index: 2, kind: input, shape index: {}]
  %s3 = inlined_call_operand.vmem [shape: bf16[128,128], index: 3, kind: input, shape index: {}]
  %s4 = inlined_call_operand.vmem [shape: f32[1,128], index: 4, kind: input, shape index: {}]
  %s5 = inlined_call_operand.vmem [shape: bf16[128,784], index: 5, kind: input, shape index: {}]
  %s6 = inlined_call_operand.vmem [shape: f32[1,784], index: 6, kind: input, shape index: {}]
  %s7 = inlined_call_operand.vmem [shape: bf16[16,784], index: 7, kind: output, shape index: {}]
  %s8 = sld [smem:[#allocation0]]
  $region38: #{linear_decoder.1} parent=0
    _
  %s10 = ssub.s32 1, %s8
  %s11 = scalar_select 0, %s10, %s8
  // Predicated region
  $region2: #{linear_decoder.1} parent=0 // pred_check
    _
  $region3: #{linear_decoder.1} parent=0 // pred_check_branch
    %13 = sbr.rel (0) target = $region5
  $region4: #{linear_decoder.1} parent=0 // pred_region
    _
  $region5: #{linear_decoder.1} parent=0 // pred_fallthru
    _
  // Predicated region
  $region6: #{linear_decoder.1} parent=0 // pred_check
    _
  $region7: #{linear_decoder.1} parent=0 // pred_check_branch
    %15 = sbr.rel (0) target = $region9
  $region8: #{linear_decoder.1} parent=0 // pred_region
    _
  $region9: #{linear_decoder.1} parent=0 // pred_fallthru
    _
  // Predicated region
  $region10: #{linear_decoder.1} parent=0 // pred_check
    _
  $region11: #{linear_decoder.1} parent=0 // pred_check_branch
    %17 = sbr.rel (0) target = $region13
  $region12: #{linear_decoder.1} parent=0 // pred_region
    _
  $region13: #{linear_decoder.1} parent=0 // pred_fallthru
    _
  // Predicated region
  $region14: #{linear_decoder.1} parent=0 // pred_check
    _
  $region15: #{linear_decoder.1} parent=0 // pred_check_branch
    %19 = sbr.rel (0) target = $region17
  $region16: #{linear_decoder.1} parent=0 // pred_region
    _
  $region17: #{linear_decoder.1} parent=0 // pred_fallthru
    _
  // Predicated region
  $region18: #{linear_decoder.1} parent=0 // pred_check
    _
  $region19: #{linear_decoder.1} parent=0 // pred_check_branch
    %21 = sbr.rel (0) target = $region21
  $region20: #{linear_decoder.1} parent=0 // pred_region
    _
  $region21: #{linear_decoder.1} parent=0 // pred_fallthru
    _
  // Predicated region
  $region22: #{linear_decoder.1} parent=0 // pred_check
    _
  $region23: #{linear_decoder.1} parent=0 // pred_check_branch
    %23 = sbr.rel (0) target = $region25
  $region24: #{linear_decoder.1} parent=0 // pred_region
    _
  $region25: #{linear_decoder.1} parent=0 // pred_fallthru
    _
  // Predicated region
  $region26: #{linear_decoder.1} parent=0 // pred_check
    _
  $region27: #{linear_decoder.1} parent=0 // pred_check_branch
    %25 = sbr.rel (0) target = $region29
  $region28: #{linear_decoder.1} parent=0 // pred_region
    _
  $region29: #{linear_decoder.1} parent=0 // pred_fallthru
    _
  %v27 = vld [vmem:[%s0] sm:$0xf]
  %v28 = vld [vmem:[%s0 + $0x4] sm:$0xf]
  %v29 = vld [vmem:[%s1] sm:$0xf]
  %v30 = vld [vmem:[%s1 + $0x4] sm:$0xf]
  %v31 = vld [vmem:[%s1 + $0x8] sm:$0xf]
  %v32 = vld [vmem:[%s1 + $0xc] sm:$0xf]
  %v33 = vld [vmem:[%s2] sm:$0x1]
  %v35 = vperm.slane %v33, 0
  %v39 = vunpack.c.l.b16 %v27
  %v40 = vunpack.c.l.b16 %v28
  %v41 = vpack.c.b16 %v40, %v39
  %v46 = vunpack.c.l.b16 %v29
  %v47 = vunpack.c.l.b16 %v30
  %v48 = vunpack.c.l.b16 %v31
  %v49 = vunpack.c.l.b16 %v32
  %v50 = vpack.c.b16 %v47, %v46
  %v51 = vpack.c.b16 %v49, %v48
  %vm54 = vcmask 261120
  %v56 = vsel %vm54, %v41, 0
  %58 = vmatpush.bf16.msra.mxu0 0
  %59 = vmatpush.bf16.msra.mxu0 0
  %60 = vmatpush.bf16.msra.mxu0 0
  %61 = vmatpush.bf16.msra.mxu0 0
  %62 = vmatpush.bf16.msra.mxu0 0
  %63 = vmatpush.bf16.msra.mxu0 0
  %64 = vmatpush.bf16.msra.mxu0 %v51
  %65 = vmatpush.bf16.msra.mxu0 %v50
  %66 = vmatmul.bf16.gmra.mxu0 %v56
  %v67 = vpop.f32.mrf.mxu0
  %v68 = vadd.f32 %v35, %v67
  %v69 = vpop.f32.mrf.mxu0
  %v70 = vadd.f32 %v35, %v69
  %71 = vdwg.mxu0
  %v72 = vmax.f32 %v68, 0.0
  %v73 = vmax.f32 %v70, 0.0
  %v74 = vpack.c.bf16 %v73, %v72
  %v75 = vld [vmem:[%s3] sm:$0xf]
  %v76 = vld [vmem:[%s3 + $0x4] sm:$0xf]
  %v77 = vld [vmem:[%s3 + $0x8] sm:$0xf]
  %v78 = vld [vmem:[%s3 + $0xc] sm:$0xf]
  %v79 = vld [vmem:[%s3 + $0x10] sm:$0xf]
  %v80 = vld [vmem:[%s3 + $0x14] sm:$0xf]
  %v81 = vld [vmem:[%s3 + $0x18] sm:$0xf]
  %v82 = vld [vmem:[%s3 + $0x1c] sm:$0xf]
  %v83 = vld [vmem:[%s3 + $0x20] sm:$0xf]
  %v84 = vld [vmem:[%s3 + $0x24] sm:$0xf]
  %v85 = vld [vmem:[%s3 + $0x28] sm:$0xf]
  %v86 = vld [vmem:[%s3 + $0x2c] sm:$0xf]
  %v87 = vld [vmem:[%s3 + $0x30] sm:$0xf]
  %v88 = vld [vmem:[%s3 + $0x34] sm:$0xf]
  %v89 = vld [vmem:[%s3 + $0x38] sm:$0xf]
  %v90 = vld [vmem:[%s3 + $0x3c] sm:$0xf]
  %v91 = vld [vmem:[%s4] sm:$0x1]
  %v93 = vperm.slane %v91, 0
  %v111 = vunpack.c.l.b16 %v75
  %v112 = vunpack.c.l.b16 %v76
  %v113 = vunpack.c.l.b16 %v77
  %v114 = vunpack.c.l.b16 %v78
  %v115 = vunpack.c.l.b16 %v79
  %v116 = vunpack.c.l.b16 %v80
  %v117 = vunpack.c.l.b16 %v81
  %v118 = vunpack.c.l.b16 %v82
  %v119 = vunpack.c.l.b16 %v83
  %v120 = vunpack.c.l.b16 %v84
  %v121 = vunpack.c.l.b16 %v85
  %v122 = vunpack.c.l.b16 %v86
  %v123 = vunpack.c.l.b16 %v87
  %v124 = vunpack.c.l.b16 %v88
  %v125 = vunpack.c.l.b16 %v89
  %v126 = vunpack.c.l.b16 %v90
  %v127 = vpack.c.b16 %v112, %v111
  %v128 = vpack.c.b16 %v114, %v113
  %v129 = vpack.c.b16 %v116, %v115
  %v130 = vpack.c.b16 %v118, %v117
  %v131 = vpack.c.b16 %v120, %v119
  %v132 = vpack.c.b16 %v122, %v121
  %v133 = vpack.c.b16 %v124, %v123
  %v134 = vpack.c.b16 %v126, %v125
  %143 = vmatpush.bf16.msra.mxu0 %v134
  %144 = vmatpush.bf16.msra.mxu0 %v133
  %145 = vmatpush.bf16.msra.mxu0 %v132
  %146 = vmatpush.bf16.msra.mxu0 %v131
  %147 = vmatpush.bf16.msra.mxu0 %v130
  %148 = vmatpush.bf16.msra.mxu0 %v129
  %149 = vmatpush.bf16.msra.mxu0 %v128
  %150 = vmatpush.bf16.msra.mxu0 %v127
  %151 = vmatmul.bf16.gmra.mxu0 %v74
  %v152 = vpop.f32.mrf.mxu0
  %v153 = vadd.f32 %v93, %v152
  %v154 = vpop.f32.mrf.mxu0
  %v155 = vadd.f32 %v93, %v154
  %156 = vdwg.mxu0
  %v157 = vmax.f32 %v153, 0.0
  %v158 = vmax.f32 %v155, 0.0
  %v159 = vpack.c.bf16 %v158, %v157
  %v160 = vld [vmem:[%s5] sm:$0xff]
  %v161 = vld [vmem:[%s5 + $0x8] sm:$0xff]
  %v162 = vld [vmem:[%s5 + $0x10] sm:$0xff]
  %v163 = vld [vmem:[%s5 + $0x18] sm:$0xf]
  %v164 = vld [vmem:[%s5 + $0x1c] sm:$0xff]
  %v165 = vld [vmem:[%s5 + $0x24] sm:$0xff]
  %v166 = vld [vmem:[%s5 + $0x2c] sm:$0xff]
  %v167 = vld [vmem:[%s5 + $0x34] sm:$0xf]
  %v168 = vld [vmem:[%s5 + $0x38] sm:$0xff]
  %v169 = vld [vmem:[%s5 + $0x40] sm:$0xff]
  %v170 = vld [vmem:[%s5 + $0x48] sm:$0xff]
  %v171 = vld [vmem:[%s5 + $0x50] sm:$0xf]
  %v172 = vld [vmem:[%s5 + $0x54] sm:$0xff]
  %v173 = vld [vmem:[%s5 + $0x5c] sm:$0xff]
  %v174 = vld [vmem:[%s5 + $0x64] sm:$0xff]
  %v175 = vld [vmem:[%s5 + $0x6c] sm:$0xf]
  %v176 = vld [vmem:[%s5 + $0x70] sm:$0xff]
  %v177 = vld [vmem:[%s5 + $0x78] sm:$0xff]
  %v178 = vld [vmem:[%s5 + $0x80] sm:$0xff]
  %v179 = vld [vmem:[%s5 + $0x88] sm:$0xf]
  %v180 = vld [vmem:[%s5 + $0x8c] sm:$0xff]
  %v181 = vld [vmem:[%s5 + $0x94] sm:$0xff]
  %v182 = vld [vmem:[%s5 + $0x9c] sm:$0xff]
  %v183 = vld [vmem:[%s5 + $0xa4] sm:$0xf]
  %v184 = vld [vmem:[%s5 + $0xa8] sm:$0xff]
  %v185 = vld [vmem:[%s5 + $0xb0] sm:$0xff]
  %v186 = vld [vmem:[%s5 + $0xb8] sm:$0xff]
  %v187 = vld [vmem:[%s5 + $0xc0] sm:$0xf]
  %v188 = vld [vmem:[%s5 + $0xc4] sm:$0xff]
  %v189 = vld [vmem:[%s5 + $0xcc] sm:$0xff]
  %v190 = vld [vmem:[%s5 + $0xd4] sm:$0xff]
  %v191 = vld [vmem:[%s5 + $0xdc] sm:$0xf]
  %v192 = vld [vmem:[%s5 + $0xe0] sm:$0xff]
  %v193 = vld [vmem:[%s5 + $0xe8] sm:$0xff]
  %v194 = vld [vmem:[%s5 + $0xf0] sm:$0xff]
  %v195 = vld [vmem:[%s5 + $0xf8] sm:$0xf]
  %v196 = vld [vmem:[%s5 + $0xfc] sm:$0xff]
  %v197 = vld [vmem:[%s5 + $0x104] sm:$0xff]
  %v198 = vld [vmem:[%s5 + $0x10c] sm:$0xff]
  %v199 = vld [vmem:[%s5 + $0x114] sm:$0xf]
  %v200 = vld [vmem:[%s5 + $0x118] sm:$0xff]
  %v201 = vld [vmem:[%s5 + $0x120] sm:$0xff]
  %v202 = vld [vmem:[%s5 + $0x128] sm:$0xff]
  %v203 = vld [vmem:[%s5 + $0x130] sm:$0xf]
  %v204 = vld [vmem:[%s5 + $0x134] sm:$0xff]
  %v205 = vld [vmem:[%s5 + $0x13c] sm:$0xff]
  %v206 = vld [vmem:[%s5 + $0x144] sm:$0xff]
  %v207 = vld [vmem:[%s5 + $0x14c] sm:$0xf]
  %v208 = vld [vmem:[%s5 + $0x150] sm:$0xff]
  %v209 = vld [vmem:[%s5 + $0x158] sm:$0xff]
  %v210 = vld [vmem:[%s5 + $0x160] sm:$0xff]
  %v211 = vld [vmem:[%s5 + $0x168] sm:$0xf]
  %v212 = vld [vmem:[%s5 + $0x16c] sm:$0xff]
  %v213 = vld [vmem:[%s5 + $0x174] sm:$0xff]
  %v214 = vld [vmem:[%s5 + $0x17c] sm:$0xff]
  %v215 = vld [vmem:[%s5 + $0x184] sm:$0xf]
  %v216 = vld [vmem:[%s5 + $0x188] sm:$0xff]
  %v217 = vld [vmem:[%s5 + $0x190] sm:$0xff]
  %v218 = vld [vmem:[%s5 + $0x198] sm:$0xff]
  %v219 = vld [vmem:[%s5 + $0x1a0] sm:$0xf]
  %v220 = vld [vmem:[%s5 + $0x1a4] sm:$0xff]
  %v221 = vld [vmem:[%s5 + $0x1ac] sm:$0xff]
  %v222 = vld [vmem:[%s5 + $0x1b4] sm:$0xff]
  %v223 = vld [vmem:[%s5 + $0x1bc] sm:$0xf]
  %v224 = vld [vmem:[%s6] sm:$0x7f]
  %v226 = vperm.slane %v224, 0
  %v227 = vperm.slane %v224, 1
  %v228 = vperm.slane %v224, 2
  %v229 = vperm.slane %v224, 3
  %v230 = vperm.slane %v224, 4
  %v231 = vperm.slane %v224, 5
  %v232 = vperm.slane %v224, 6
  %v304 = vunpack.c.l.b16 %v160
  %v305 = vunpack.c.h.b16 %v160
  %v306 = vunpack.c.l.b16 %v161
  %v307 = vunpack.c.h.b16 %v161
  %v308 = vunpack.c.l.b16 %v162
  %v309 = vunpack.c.h.b16 %v162
  %v310 = vunpack.c.l.b16 %v163
  %v311 = vunpack.c.l.b16 %v164
  %v312 = vunpack.c.h.b16 %v164
  %v313 = vunpack.c.l.b16 %v165
  %v314 = vunpack.c.h.b16 %v165
  %v315 = vunpack.c.l.b16 %v166
  %v316 = vunpack.c.h.b16 %v166
  %v317 = vunpack.c.l.b16 %v167
  %v318 = vunpack.c.l.b16 %v168
  %v319 = vunpack.c.h.b16 %v168
  %v320 = vunpack.c.l.b16 %v169
  %v321 = vunpack.c.h.b16 %v169
  %v322 = vunpack.c.l.b16 %v170
  %v323 = vunpack.c.h.b16 %v170
  %v324 = vunpack.c.l.b16 %v171
  %v325 = vunpack.c.l.b16 %v172
  %v326 = vunpack.c.h.b16 %v172
  %v327 = vunpack.c.l.b16 %v173
  %v328 = vunpack.c.h.b16 %v173
  %v329 = vunpack.c.l.b16 %v174
  %v330 = vunpack.c.h.b16 %v174
  %v331 = vunpack.c.l.b16 %v175
  %v332 = vunpack.c.l.b16 %v176
  %v333 = vunpack.c.h.b16 %v176
  %v334 = vunpack.c.l.b16 %v177
  %v335 = vunpack.c.h.b16 %v177
  %v336 = vunpack.c.l.b16 %v178
  %v337 = vunpack.c.h.b16 %v178
  %v338 = vunpack.c.l.b16 %v179
  %v339 = vunpack.c.l.b16 %v180
  %v340 = vunpack.c.h.b16 %v180
  %v341 = vunpack.c.l.b16 %v181
  %v342 = vunpack.c.h.b16 %v181
  %v343 = vunpack.c.l.b16 %v182
  %v344 = vunpack.c.h.b16 %v182
  %v345 = vunpack.c.l.b16 %v183
  %v346 = vunpack.c.l.b16 %v184
  %v347 = vunpack.c.h.b16 %v184
  %v348 = vunpack.c.l.b16 %v185
  %v349 = vunpack.c.h.b16 %v185
  %v350 = vunpack.c.l.b16 %v186
  %v351 = vunpack.c.h.b16 %v186
  %v352 = vunpack.c.l.b16 %v187
  %v353 = vunpack.c.l.b16 %v188
  %v354 = vunpack.c.h.b16 %v188
  %v355 = vunpack.c.l.b16 %v189
  %v356 = vunpack.c.h.b16 %v189
  %v357 = vunpack.c.l.b16 %v190
  %v358 = vunpack.c.h.b16 %v190
  %v359 = vunpack.c.l.b16 %v191
  %v360 = vunpack.c.l.b16 %v192
  %v361 = vunpack.c.h.b16 %v192
  %v362 = vunpack.c.l.b16 %v193
  %v363 = vunpack.c.h.b16 %v193
  %v364 = vunpack.c.l.b16 %v194
  %v365 = vunpack.c.h.b16 %v194
  %v366 = vunpack.c.l.b16 %v195
  %v367 = vunpack.c.l.b16 %v196
  %v368 = vunpack.c.h.b16 %v196
  %v369 = vunpack.c.l.b16 %v197
  %v370 = vunpack.c.h.b16 %v197
  %v371 = vunpack.c.l.b16 %v198
  %v372 = vunpack.c.h.b16 %v198
  %v373 = vunpack.c.l.b16 %v199
  %v374 = vunpack.c.l.b16 %v200
  %v375 = vunpack.c.h.b16 %v200
  %v376 = vunpack.c.l.b16 %v201
  %v377 = vunpack.c.h.b16 %v201
  %v378 = vunpack.c.l.b16 %v202
  %v379 = vunpack.c.h.b16 %v202
  %v380 = vunpack.c.l.b16 %v203
  %v381 = vunpack.c.l.b16 %v204
  %v382 = vunpack.c.h.b16 %v204
  %v383 = vunpack.c.l.b16 %v205
  %v384 = vunpack.c.h.b16 %v205
  %v385 = vunpack.c.l.b16 %v206
  %v386 = vunpack.c.h.b16 %v206
  %v387 = vunpack.c.l.b16 %v207
  %v388 = vunpack.c.l.b16 %v208
  %v389 = vunpack.c.h.b16 %v208
  %v390 = vunpack.c.l.b16 %v209
  %v391 = vunpack.c.h.b16 %v209
  %v392 = vunpack.c.l.b16 %v210
  %v393 = vunpack.c.h.b16 %v210
  %v394 = vunpack.c.l.b16 %v211
  %v395 = vunpack.c.l.b16 %v212
  %v396 = vunpack.c.h.b16 %v212
  %v397 = vunpack.c.l.b16 %v213
  %v398 = vunpack.c.h.b16 %v213
  %v399 = vunpack.c.l.b16 %v214
  %v400 = vunpack.c.h.b16 %v214
  %v401 = vunpack.c.l.b16 %v215
  %v402 = vunpack.c.l.b16 %v216
  %v403 = vunpack.c.h.b16 %v216
  %v404 = vunpack.c.l.b16 %v217
  %v405 = vunpack.c.h.b16 %v217
  %v406 = vunpack.c.l.b16 %v218
  %v407 = vunpack.c.h.b16 %v218
  %v408 = vunpack.c.l.b16 %v219
  %v409 = vunpack.c.l.b16 %v220
  %v410 = vunpack.c.h.b16 %v220
  %v411 = vunpack.c.l.b16 %v221
  %v412 = vunpack.c.h.b16 %v221
  %v413 = vunpack.c.l.b16 %v222
  %v414 = vunpack.c.h.b16 %v222
  %v415 = vunpack.c.l.b16 %v223
  %v416 = vpack.c.b16 %v311, %v304
  %v417 = vpack.c.b16 %v312, %v305
  %v418 = vpack.c.b16 %v313, %v306
  %v419 = vpack.c.b16 %v314, %v307
  %v420 = vpack.c.b16 %v315, %v308
  %v421 = vpack.c.b16 %v316, %v309
  %v422 = vpack.c.b16 %v317, %v310
  %v423 = vpack.c.b16 %v325, %v318
  %v424 = vpack.c.b16 %v326, %v319
  %v425 = vpack.c.b16 %v327, %v320
  %v426 = vpack.c.b16 %v328, %v321
  %v427 = vpack.c.b16 %v329, %v322
  %v428 = vpack.c.b16 %v330, %v323
  %v429 = vpack.c.b16 %v331, %v324
  %v430 = vpack.c.b16 %v339, %v332
  %v431 = vpack.c.b16 %v340, %v333
  %v432 = vpack.c.b16 %v341, %v334
  %v433 = vpack.c.b16 %v342, %v335
  %v434 = vpack.c.b16 %v343, %v336
  %v435 = vpack.c.b16 %v344, %v337
  %v436 = vpack.c.b16 %v345, %v338
  %v437 = vpack.c.b16 %v353, %v346
  %v438 = vpack.c.b16 %v354, %v347
  %v439 = vpack.c.b16 %v355, %v348
  %v440 = vpack.c.b16 %v356, %v349
  %v441 = vpack.c.b16 %v357, %v350
  %v442 = vpack.c.b16 %v358, %v351
  %v443 = vpack.c.b16 %v359, %v352
  %v444 = vpack.c.b16 %v367, %v360
  %v445 = vpack.c.b16 %v368, %v361
  %v446 = vpack.c.b16 %v369, %v362
  %v447 = vpack.c.b16 %v370, %v363
  %v448 = vpack.c.b16 %v371, %v364
  %v449 = vpack.c.b16 %v372, %v365
  %v450 = vpack.c.b16 %v373, %v366
  %v451 = vpack.c.b16 %v381, %v374
  %v452 = vpack.c.b16 %v382, %v375
  %v453 = vpack.c.b16 %v383, %v376
  %v454 = vpack.c.b16 %v384, %v377
  %v455 = vpack.c.b16 %v385, %v378
  %v456 = vpack.c.b16 %v386, %v379
  %v457 = vpack.c.b16 %v387, %v380
  %v458 = vpack.c.b16 %v395, %v388
  %v459 = vpack.c.b16 %v396, %v389
  %v460 = vpack.c.b16 %v397, %v390
  %v461 = vpack.c.b16 %v398, %v391
  %v462 = vpack.c.b16 %v399, %v392
  %v463 = vpack.c.b16 %v400, %v393
  %v464 = vpack.c.b16 %v401, %v394
  %v465 = vpack.c.b16 %v409, %v402
  %v466 = vpack.c.b16 %v410, %v403
  %v467 = vpack.c.b16 %v411, %v404
  %v468 = vpack.c.b16 %v412, %v405
  %v469 = vpack.c.b16 %v413, %v406
  %v470 = vpack.c.b16 %v414, %v407
  %v471 = vpack.c.b16 %v415, %v408
  %528 = vmatpush.bf16.msra.mxu0 %v465
  %529 = vmatpush.bf16.msra.mxu0 %v458
  %530 = vmatpush.bf16.msra.mxu0 %v451
  %531 = vmatpush.bf16.msra.mxu0 %v444
  %532 = vmatpush.bf16.msra.mxu0 %v437
  %533 = vmatpush.bf16.msra.mxu0 %v430
  %534 = vmatpush.bf16.msra.mxu0 %v423
  %535 = vmatpush.bf16.msra.mxu0 %v416
  %536 = vmatmul.bf16.gmra.mxu0 %v159
  %v537 = vpop.f32.mrf.mxu0
  %v538 = vadd.f32 %v226, %v537
  %v539 = vpop.f32.mrf.mxu0
  %v540 = vadd.f32 %v226, %v539
  %541 = vdwg.mxu0
  %542 = vmatpush.bf16.msra.mxu0 %v466
  %543 = vmatpush.bf16.msra.mxu0 %v459
  %544 = vmatpush.bf16.msra.mxu0 %v452
  %545 = vmatpush.bf16.msra.mxu0 %v445
  %546 = vmatpush.bf16.msra.mxu0 %v438
  %547 = vmatpush.bf16.msra.mxu0 %v431
  %548 = vmatpush.bf16.msra.mxu0 %v424
  %549 = vmatpush.bf16.msra.mxu0 %v417
  %550 = vmatmul.bf16.gmra.mxu0 %v159
  %v551 = vpop.f32.mrf.mxu0
  %v552 = vadd.f32 %v227, %v551
  %v553 = vpop.f32.mrf.mxu0
  %v554 = vadd.f32 %v227, %v553
  %555 = vdwg.mxu0
  %556 = vmatpush.bf16.msra.mxu0 %v467
  %557 = vmatpush.bf16.msra.mxu0 %v460
  %558 = vmatpush.bf16.msra.mxu0 %v453
  %559 = vmatpush.bf16.msra.mxu0 %v446
  %560 = vmatpush.bf16.msra.mxu0 %v439
  %561 = vmatpush.bf16.msra.mxu0 %v432
  %562 = vmatpush.bf16.msra.mxu0 %v425
  %563 = vmatpush.bf16.msra.mxu0 %v418
  %564 = vmatmul.bf16.gmra.mxu0 %v159
  %v565 = vpop.f32.mrf.mxu0
  %v566 = vadd.f32 %v228, %v565
  %v567 = vpop.f32.mrf.mxu0
  %v568 = vadd.f32 %v228, %v567
  %569 = vdwg.mxu0
  %570 = vmatpush.bf16.msra.mxu0 %v468
  %571 = vmatpush.bf16.msra.mxu0 %v461
  %572 = vmatpush.bf16.msra.mxu0 %v454
  %573 = vmatpush.bf16.msra.mxu0 %v447
  %574 = vmatpush.bf16.msra.mxu0 %v440
  %575 = vmatpush.bf16.msra.mxu0 %v433
  %576 = vmatpush.bf16.msra.mxu0 %v426
  %577 = vmatpush.bf16.msra.mxu0 %v419
  %578 = vmatmul.bf16.gmra.mxu0 %v159
  %v579 = vpop.f32.mrf.mxu0
  %v580 = vadd.f32 %v229, %v579
  %v581 = vpop.f32.mrf.mxu0
  %v582 = vadd.f32 %v229, %v581
  %583 = vdwg.mxu0
  %584 = vmatpush.bf16.msra.mxu0 %v469
  %585 = vmatpush.bf16.msra.mxu0 %v462
  %586 = vmatpush.bf16.msra.mxu0 %v455
  %587 = vmatpush.bf16.msra.mxu0 %v448
  %588 = vmatpush.bf16.msra.mxu0 %v441
  %589 = vmatpush.bf16.msra.mxu0 %v434
  %590 = vmatpush.bf16.msra.mxu0 %v427
  %591 = vmatpush.bf16.msra.mxu0 %v420
  %592 = vmatmul.bf16.gmra.mxu0 %v159
  %v593 = vpop.f32.mrf.mxu0
  %v594 = vadd.f32 %v230, %v593
  %v595 = vpop.f32.mrf.mxu0
  %v596 = vadd.f32 %v230, %v595
  %597 = vdwg.mxu0
  %598 = vmatpush.bf16.msra.mxu0 %v470
  %599 = vmatpush.bf16.msra.mxu0 %v463
  %600 = vmatpush.bf16.msra.mxu0 %v456
  %601 = vmatpush.bf16.msra.mxu0 %v449
  %602 = vmatpush.bf16.msra.mxu0 %v442
  %603 = vmatpush.bf16.msra.mxu0 %v435
  %604 = vmatpush.bf16.msra.mxu0 %v428
  %605 = vmatpush.bf16.msra.mxu0 %v421
  %606 = vmatmul.bf16.gmra.mxu0 %v159
  %v607 = vpop.f32.mrf.mxu0
  %v608 = vadd.f32 %v231, %v607
  %v609 = vpop.f32.mrf.mxu0
  %v610 = vadd.f32 %v231, %v609
  %611 = vdwg.mxu0
  %612 = vmatpush.bf16.msra.mxu0 %v471
  %613 = vmatpush.bf16.msra.mxu0 %v464
  %614 = vmatpush.bf16.msra.mxu0 %v457
  %615 = vmatpush.bf16.msra.mxu0 %v450
  %616 = vmatpush.bf16.msra.mxu0 %v443
  %617 = vmatpush.bf16.msra.mxu0 %v436
  %618 = vmatpush.bf16.msra.mxu0 %v429
  %619 = vmatpush.bf16.msra.mxu0 %v422
  %620 = vmatmul.bf16.gmra.mxu0 %v159
  %v621 = vpop.f32.mrf.mxu0
  %v622 = vadd.f32 %v232, %v621
  %v623 = vpop.f32.mrf.mxu0
  %v624 = vadd.f32 %v232, %v623
  %625 = vdwg.mxu0
  %v626 = vmul.f32 %v538, 0.5
  %v627 = vmul.f32 %v552, 0.5
  %v628 = vmul.f32 %v566, 0.5
  %v629 = vmul.f32 %v580, 0.5
  %v630 = vmul.f32 %v594, 0.5
  %v631 = vmul.f32 %v608, 0.5
  %v632 = vmul.f32 %v622, 0.5
  %v633 = vmul.f32 %v540, 0.5
  %v634 = vmul.f32 %v554, 0.5
  %v635 = vmul.f32 %v568, 0.5
  %v636 = vmul.f32 %v582, 0.5
  %v637 = vmul.f32 %v596, 0.5
  %v638 = vmul.f32 %v610, 0.5
  %v639 = vmul.f32 %v624, 0.5
  %v640 = vtanh.pop %v626
  %v641 = vtanh.pop %v627
  %v642 = vtanh.pop %v628
  %v643 = vtanh.pop %v629
  %v644 = vtanh.pop %v630
  %v645 = vtanh.pop %v631
  %v646 = vtanh.pop %v632
  %v647 = vtanh.pop %v633
  %v648 = vtanh.pop %v634
  %v649 = vtanh.pop %v635
  %v650 = vtanh.pop %v636
  %v651 = vtanh.pop %v637
  %v652 = vtanh.pop %v638
  %v653 = vtanh.pop %v639
  %v654 = vadd.f32 %v640, 1.0
  %v655 = vadd.f32 %v641, 1.0
  %v656 = vadd.f32 %v642, 1.0
  %v657 = vadd.f32 %v643, 1.0
  %v658 = vadd.f32 %v644, 1.0
  %v659 = vadd.f32 %v645, 1.0
  %v660 = vadd.f32 %v646, 1.0
  %v661 = vadd.f32 %v647, 1.0
  %v662 = vadd.f32 %v648, 1.0
  %v663 = vadd.f32 %v649, 1.0
  %v664 = vadd.f32 %v650, 1.0
  %v665 = vadd.f32 %v651, 1.0
  %v666 = vadd.f32 %v652, 1.0
  %v667 = vadd.f32 %v653, 1.0
  %v668 = vmul.f32 %v654, 0.5
  %v669 = vmul.f32 %v655, 0.5
  %v670 = vmul.f32 %v656, 0.5
  %v671 = vmul.f32 %v657, 0.5
  %v672 = vmul.f32 %v658, 0.5
  %v673 = vmul.f32 %v659, 0.5
  %v674 = vmul.f32 %v660, 0.5
  %v675 = vmul.f32 %v661, 0.5
  %v676 = vmul.f32 %v662, 0.5
  %v677 = vmul.f32 %v663, 0.5
  %v678 = vmul.f32 %v664, 0.5
  %v679 = vmul.f32 %v665, 0.5
  %v680 = vmul.f32 %v666, 0.5
  %v681 = vmul.f32 %v667, 0.5
  %v682 = vpack.c.bf16 %v669, %v668
  %v683 = vpack.c.bf16 %v671, %v670
  %v684 = vpack.c.bf16 %v673, %v672
  %v685 = vpack.c.bf16 %v674, %v674
  %v686 = vpack.c.bf16 %v676, %v675
  %v687 = vpack.c.bf16 %v678, %v677
  %v688 = vpack.c.bf16 %v680, %v679
  %v689 = vpack.c.bf16 %v681, %v681
  %690 = vst [vmem:[%s7] sm:$0xff] %v682
  %691 = vst [vmem:[%s7 + $0x8] sm:$0xff] %v683
  %692 = vst [vmem:[%s7 + $0x10] sm:$0xff] %v684
  %vm693 = vcmask 125952
  %694 = vst.msk [vmem:[%s7 + $0x18] sm:$0xf] %vm693, %v685
  %695 = vst [vmem:[%s7 + $0x1c] sm:$0xff] %v686
  %696 = vst [vmem:[%s7 + $0x24] sm:$0xff] %v687
  %697 = vst [vmem:[%s7 + $0x2c] sm:$0xff] %v688
  %698 = vst.msk [vmem:[%s7 + $0x34] sm:$0xf] %vm693, %v689
  // Predicated region
  $region30: #{linear_decoder.1} parent=0 // pred_check
    _
  $region31: #{linear_decoder.1} parent=0 // pred_check_branch
    %700 = sbr.rel (0) target = $region33
  $region32: #{linear_decoder.1} parent=0 // pred_region
    _
  $region33: #{linear_decoder.1} parent=0 // pred_fallthru
    _
  // Predicated region
  $region34: #{linear_decoder.1} parent=0 // pred_check
    _
  $region35: #{linear_decoder.1} parent=0 // pred_check_branch
    %702 = sbr.rel (0) target = $region37
  $region36: #{linear_decoder.1} parent=0 // pred_region
    _
  $region37: #{linear_decoder.1} parent=0 // pred_fallthru
    _

</llo_original>
